<compile_context>
chip_gen: v7x
topology: tpu7x:2x2x1
jax: 0.10.0
libtpu: 0.0.40
codegen_flags: <defaults>
</compile_context>

<pallas_src>
import functools

import jax
import jax.numpy as jnp
from jax import lax
from jax.experimental import pallas as pl
from jax.experimental.pallas import tpu as pltpu


def _round_up(x, m):
    return ((x + m - 1) // m) * m


def _tpu_vmem_capacity_bytes():
    """Per-TensorCore VMEM capacity (~128 MiB v5e/v6e, ~64 MiB v7x)."""
    cap = 64 << 20  # conservative fallback = v7x per-core figure
    try:
        info = pltpu.get_tpu_info()
        c = int(getattr(info, "vmem_capacity_bytes", 0))
        if c > 0:
            cap = c
    except Exception:
        pass
    return cap


def _pick_tn_inner(tn_grid):
    """In-kernel column chunk: largest of 512/256/128 dividing tn_grid."""
    for cand in (512, 256, 128):
        if tn_grid % cand == 0:
            return cand
    return tn_grid  # odd N: single full-width chunk


def _select_tiles(m, h, n, x_itemsize, w_itemsize, mxu_itemsize, tm_req, budget):
    """Pick (row tile tm, grid N block tn_grid, in-kernel chunk tn_inner)."""

    def per_row_bytes(tn_inner):
        # double-buffered x tile + in-kernel x cast temp
        # + f32 (tm, tn_inner) intermediate and h*w2 product temp
        # + acc scratch + double-buffered (tm, 1) output.
        return 2 * h * x_itemsize + h * mxu_itemsize + 2 * tn_inner * 4 + 12

    # Resident path: W1/b1/w2 live in VMEM once (single-buffered), kernel
    # chunks columns internally.  Chosen if it still leaves room for at least
    # a 128-row activation tile.
    tn_inner_res = _pick_tn_inner(n)
    fixed_res = h * n * w_itemsize + 2 * n * 4 + h * tn_inner_res * mxu_itemsize
    min_tm = min(128, _round_up(m, 8))
    resident = fixed_res + min_tm * per_row_bytes(tn_inner_res) <= budget

    if resident:
        tn_grid, tn_inner = n, tn_inner_res
        fixed = fixed_res
    else:
        # Streamed path: W1 is DMA'd in (H, tn_grid) column blocks
        # (double-buffered) along a second 'arbitrary' reduction grid axis.
        per_col = 2 * (h * w_itemsize + 8)
        tn_max = min(max(int(0.5 * budget) // per_col, 128), _round_up(n, 128))
        tn_grid = 0
        for cand in range((tn_max // 128) * 128, 127, -128):
            if n % cand == 0:          # prefer a block dividing N (no weight pad)
                tn_grid = cand
                break
        if tn_grid == 0:
            tn_grid = max(128, (tn_max // 128) * 128)
        # TODO(synk): if even a single 128-wide W1 column block overflows VMEM
        # (extreme H), a K-split over H with an f32 accumulator is needed.
        tn_inner = _pick_tn_inner(tn_grid)
        fixed = (2 * h * tn_grid * w_itemsize + 2 * 2 * tn_grid * 4
                 + h * tn_inner * mxu_itemsize)

    tm = max(8, min(_round_up(tm_req, 8), _round_up(m, 8)))
    while tm > 8 and fixed + tm * per_row_bytes(tn_inner) > budget:
        tm = max(8, _round_up(tm // 2, 8))

    est_vmem = fixed + tm * per_row_bytes(tn_inner)
    return tm, tn_grid, tn_inner, resident, est_vmem


def _value_head_kernel(x_ref, w1_ref, b1_ref, w2_ref, b2_ref, o_ref, acc_ref,
                       *, n_chunks, tn_inner, mxu_dtype):
    # x_ref:  (tm, H)        activation rows (original dtype; cast in-kernel)
    # w1_ref: (H, tn_grid)   first Linear weight block (stored dtype)
    # b1_ref: (1, tn_grid)   first Linear bias (f32)
    # w2_ref: (1, tn_grid)   final Linear weight as a lane-dense row (f32)
    # b2_ref: (1,)           final Linear bias (SMEM f32 scalar)
    # o_ref:  (tm, 1)        output rows (weight dtype)
    # acc_ref:(tm, 1) f32    per-row accumulator across the N grid axis
    n = pl.program_id(1)

    @pl.when(n == 0)
    def _():
        acc_ref[...] = jnp.zeros_like(acc_ref)

    x = x_ref[...].astype(mxu_dtype)

    def contrib(w1c, b1c, w2c):
        # Linear + ReLU on the MXU (f32 accumulation), then the Linear(N, 1)
        # tail as a VPU multiply + lane reduction (an (N,1) MXU RHS would use
        # 1/128 of the array; VPU/XLU have slack here).
        h = jnp.dot(x, w1c.astype(mxu_dtype), preferred_element_type=jnp.float32)
        h = jnp.maximum(h + b1c, 0.0)
        return jnp.sum(h * w2c, axis=-1, keepdims=True)

    if n_chunks == 1:
        acc_ref[...] += contrib(w1_ref[...], b1_ref[...], w2_ref[...])
    else:
        # Chunk the resident/streamed W1 block so the live f32 intermediate is
        # (tm, tn_inner) instead of (tm, tn_grid); lets the MXU on chunk c+1
        # overlap the VPU/XLU epilogue of chunk c.
        def body(c, v):
            off = pl.multiple_of(c * tn_inner, tn_inner)
            return v + contrib(w1_ref[:, pl.ds(off, tn_inner)],
                               b1_ref[:, pl.ds(off, tn_inner)],
                               w2_ref[:, pl.ds(off, tn_inner)])

        acc_ref[...] += lax.fori_loop(0, n_chunks, body,
                                      jnp.zeros((x.shape[0], 1), jnp.float32),
                                      unroll=n_chunks <= 8)

    @pl.when(n == pl.num_programs(1) - 1)
    def _():
        o_ref[...] = (acc_ref[...] + b2_ref[0]).astype(o_ref.dtype)


@functools.partial(jax.jit, static_argnames=("tm", "use_bf16_mxu"))
def value_head_forward(hidden_states, w1, b1, w2, b2, *, tm=1024, use_bf16_mxu=True):
    """Fused ValueHead forward (layer_type='mlp', num_layers=1), eval mode.

    hidden_states: (B, S, H); w1: (H, N); b1: (N,); w2: (N, 1); b2: (1,)
    returns (B, S, 1) in w1.dtype (the module casts activations to weight dtype).

    use_bf16_mxu=True casts f32 MXU operands to bf16 (f32 accumulation kept) —
    a deliberate precision deviation from the PyTorch f32 matmul.
    """
    B, S, H = hidden_states.shape
    N = w1.shape[1]
    M = B * S

    out_dtype = w1.dtype
    mxu_dtype = jnp.bfloat16 if (use_bf16_mxu and w1.dtype == jnp.float32) else w1.dtype

    x_itemsize = jnp.dtype(hidden_states.dtype).itemsize
    w_itemsize = jnp.dtype(w1.dtype).itemsize
    mxu_itemsize = jnp.dtype(mxu_dtype).itemsize

    # Per-core VMEM budget (v7x's 2 TCs each see their own 64 MiB, so this is
    # already the right figure for the megacore-sharded 'parallel' M axis).
    cap = _tpu_vmem_capacity_bytes()
    budget = int(cap * 0.8)

    tm, tn_grid, tn_inner, resident, est_vmem = _select_tiles(
        M, H, N, x_itemsize, w_itemsize, mxu_itemsize, tm, budget)

    # No activation padding: cdiv grid; the partial last row block is masked
    # by Pallas and its junk rows are never written back.
    x2d = hidden_states.reshape(M, H)

    # Tiny bias / final-weight rows: carry them in f32 (epilogue is f32).
    b1_row = b1.astype(jnp.float32).reshape(1, N)
    w2_row = w2.astype(jnp.float32).reshape(1, N)   # (N,1) -> lane-dense (1,N)
    b2_s = b2.astype(jnp.float32).reshape((1,))

    if resident:
        n_pad = N
        w1_in = w1
    else:
        # Streamed reduction axis must not see partial blocks (garbage columns
        # would pollute the sum), so zero-pad the *weights* (cheap vs. the
        # activation traffic; zero columns contribute exactly 0).
        n_pad = _round_up(N, tn_grid)
        if n_pad != N:
            w1_in = jnp.pad(w1, ((0, 0), (0, n_pad - N)))
            b1_row = jnp.pad(b1_row, ((0, 0), (0, n_pad - N)))
            w2_row = jnp.pad(w2_row, ((0, 0), (0, n_pad - N)))
        else:
            w1_in = w1

    grid_m = pl.cdiv(M, tm)
    grid_n = n_pad // tn_grid
    n_chunks = tn_grid // tn_inner

    # Resident weights are single-buffered; streamed blocks keep the default
    # double buffering so the next W1 column block prefetches behind the MXU.
    w_mode = {"pipeline_mode": pl.Buffered(1)} if resident else {}

    vmem_limit = int(min(max(est_vmem + (8 << 20), 32 << 20), int(cap * 0.875)))

    out2d = pl.pallas_call(
        functools.partial(_value_head_kernel, n_chunks=n_chunks,
                          tn_inner=tn_inner, mxu_dtype=mxu_dtype),
        out_shape=jax.ShapeDtypeStruct((M, 1), out_dtype),
        grid_spec=pltpu.PrefetchScalarGridSpec(
            num_scalar_prefetch=0,
            grid=(grid_m, grid_n),
            in_specs=[
                pl.BlockSpec((tm, H), lambda i, n: (i, 0)),              # x rows
                pl.BlockSpec((H, tn_grid), lambda i, n: (0, n), **w_mode),  # W1
                pl.BlockSpec((1, tn_grid), lambda i, n: (0, n), **w_mode),  # b1
                pl.BlockSpec((1, tn_grid), lambda i, n: (0, n), **w_mode),  # w2 row
                pl.BlockSpec(memory_space=pltpu.MemorySpace.SMEM),          # b2
            ],
            out_specs=pl.BlockSpec((tm, 1), lambda i, n: (i, 0)),
            scratch_shapes=[pltpu.VMEM((tm, 1), jnp.float32)],
        ),
        compiler_params=pltpu.CompilerParams(
            dimension_semantics=("parallel", "arbitrary"),
            vmem_limit_bytes=vmem_limit,
        ),
    )(x2d, w1_in, b1_row, w2_row, b2_s)

    return out2d.reshape(B, S, 1)


def _reference_forward(hidden_states, w1, b1, w2, b2):
    h = jnp.maximum(hidden_states.astype(jnp.float32) @ w1.astype(jnp.float32)
                    + b1.astype(jnp.float32), 0.0)
    return h @ w2.astype(jnp.float32) + b2.astype(jnp.float32)


if __name__ == "__main__":
    # Small shapes consistent with the module (mlp head, 1 hidden layer).
    batch, seq, hidden = 2, 8, 32
    num_neurons = 128

    key = jax.random.PRNGKey(0)
    k_x, k_w1, k_b1, k_w2, k_b2 = jax.random.split(key, 5)

    hidden_states = jax.random.normal(k_x, (batch, seq, hidden), dtype=jnp.float32)

    # Deterministic parameter init (PyTorch Linear-style uniform bounds).
    lim1 = 1.0 / (hidden ** 0.5)
    w1 = jax.random.uniform(k_w1, (hidden, num_neurons), jnp.float32, -lim1, lim1)
    b1 = jax.random.uniform(k_b1, (num_neurons,), jnp.float32, -lim1, lim1)
    lim2 = 1.0 / (num_neurons ** 0.5)
    w2 = jax.random.uniform(k_w2, (num_neurons, 1), jnp.float32, -lim2, lim2)
    b2 = jax.random.uniform(k_b2, (1,), jnp.float32, -lim2, lim2)

    out = value_head_forward(hidden_states, w1, b1, w2, b2)
    out = jax.block_until_ready(out)

    ref = _reference_forward(hidden_states, w1, b1, w2, b2)
    assert out.shape == (batch, seq, 1), out.shape
    # Tolerance covers the deliberate bf16-MXU path (f32 accumulation) vs the
    # XLA f32 reference.
    assert jnp.allclose(out.astype(jnp.float32), ref, atol=2e-2, rtol=2e-2), \
        "mismatch vs reference"

    print("KERNEL_OK")
</pallas_src>

<mosaic_0001>
module attributes {stable_mosaic.version = 11 : i64} {
  func.func @_value_head_kernel(%arg0: i32, %arg1: i32, %arg2: memref<16x32xf32, #tpu.memory_space<vmem>>, %arg3: memref<32x128xf32, #tpu.memory_space<vmem>>, %arg4: memref<1x128xf32, #tpu.memory_space<vmem>>, %arg5: memref<1x128xf32, #tpu.memory_space<vmem>>, %arg6: memref<1xf32, #tpu.memory_space<smem>>, %arg7: memref<16x1xf32, #tpu.memory_space<vmem>>, %arg8: memref<16x1xf32, #tpu.memory_space<vmem>>) attributes {dimension_semantics = [#tpu.dimension_semantics<parallel>, #tpu.dimension_semantics<arbitrary>], iteration_bounds = array<i64: 1, 1>, scalar_prefetch = 0 : i64, scratch_operands = 1 : i64, tpu.core_type = #tpu.core_type<tc>, window_params = [{transform_indices = @transform_0, window_bounds = array<i64: 16, 32>}, {pipeline_mode = #tpu.pipeline_mode<synchronous>, transform_indices = @transform_1, window_bounds = array<i64: 32, 128>}, {pipeline_mode = #tpu.pipeline_mode<synchronous>, transform_indices = @transform_2, window_bounds = array<i64: 1, 128>}, {pipeline_mode = #tpu.pipeline_mode<synchronous>, transform_indices = @transform_3, window_bounds = array<i64: 1, 128>}, {transform_indices = @transform_4, window_bounds = array<i64: 1>}, {transform_indices = @transform_5, window_bounds = array<i64: 16, 1>}]} {
    %c0_i32 = arith.constant 0 : i32
    %0 = arith.cmpi eq, %arg1, %c0_i32 : i32
    %1 = arith.extui %0 : i1 to i32
    %c0_i32_0 = arith.constant 0 : i32
    %2 = arith.cmpi ne, %1, %c0_i32_0 : i32
    scf.if %2 {
      %cst_16 = arith.constant 0.000000e+00 : f32
      %24 = vector.broadcast %cst_16 : f32 to vector<16x1xf32>
      %c0_17 = arith.constant 0 : index
      %c0_18 = arith.constant 0 : index
      %25 = vector.load %arg8[%c0_17, %c0_18] : memref<16x1xf32, #tpu.memory_space<vmem>>, vector<16x1xf32>
      tpu.vector_store %arg8[%c0_17, %c0_18], %24 {strides = array<i32>} : memref<16x1xf32, #tpu.memory_space<vmem>>, vector<16x1xf32>,
    } else {
    }
    %c0 = arith.constant 0 : index
    %c0_1 = arith.constant 0 : index
    %3 = vector.load %arg2[%c0, %c0_1] : memref<16x32xf32, #tpu.memory_space<vmem>>, vector<16x32xf32>
    %4 = arith.truncf %3 : vector<16x32xf32> to vector<16x32xbf16>
    %c0_2 = arith.constant 0 : index
    %c0_3 = arith.constant 0 : index
    %5 = vector.load %arg8[%c0_2, %c0_3] : memref<16x1xf32, #tpu.memory_space<vmem>>, vector<16x1xf32>
    %c0_4 = arith.constant 0 : index
    %c0_5 = arith.constant 0 : index
    %6 = vector.load %arg3[%c0_4, %c0_5] : memref<32x128xf32, #tpu.memory_space<vmem>>, vector<32x128xf32>
    %c0_6 = arith.constant 0 : index
    %c0_7 = arith.constant 0 : index
    %7 = vector.load %arg4[%c0_6, %c0_7] : memref<1x128xf32, #tpu.memory_space<vmem>>, vector<1x128xf32>
    %c0_8 = arith.constant 0 : index
    %c0_9 = arith.constant 0 : index
    %8 = vector.load %arg5[%c0_8, %c0_9] : memref<1x128xf32, #tpu.memory_space<vmem>>, vector<1x128xf32>
    %9 = arith.truncf %6 : vector<32x128xf32> to vector<32x128xbf16>
    %cst = arith.constant dense<0.000000e+00> : vector<16x128xf32>
    %10 = tpu.matmul %4, %9, %cst {dimension_numbers = #tpu.dot_dimension_numbers<[1], [0], [0], [1], [0, 0, 1, 1], [], []>} : vector<16x32xbf16>, vector<32x128xbf16>, vector<16x128xf32> -> vector<16x128xf32>
    %11 = vector.broadcast %7 : vector<1x128xf32> to vector<16x128xf32>
    %12 = arith.addf %10, %11 : vector<16x128xf32>
    %cst_10 = arith.constant 0.000000e+00 : f32
    %13 = vector.broadcast %cst_10 : f32 to vector<16x128xf32>
    %14 = arith.maximumf %12, %13 : vector<16x128xf32>
    %15 = vector.broadcast %8 : vector<1x128xf32> to vector<16x128xf32>
    %16 = arith.mulf %14, %15 : vector<16x128xf32>
    %cst_11 = arith.constant dense<0.000000e+00> : vector<16xf32>
    %17 = vector.multi_reduction <add>, %16, %cst_11 [1] : vector<16x128xf32> to vector<16xf32>
    %18 = vector.shape_cast %17 : vector<16xf32> to vector<16x1xf32>
    %19 = arith.addf %5, %18 : vector<16x1xf32>
    %c0_12 = arith.constant 0 : index
    %c0_13 = arith.constant 0 : index
    %20 = vector.load %arg8[%c0_12, %c0_13] : memref<16x1xf32, #tpu.memory_space<vmem>>, vector<16x1xf32>
    tpu.vector_store %arg8[%c0_12, %c0_13], %19 {strides = array<i32>} : memref<16x1xf32, #tpu.memory_space<vmem>>, vector<16x1xf32>,
    %c0_i32_14 = arith.constant 0 : i32
    %21 = arith.cmpi eq, %arg1, %c0_i32_14 : i32
    %22 = arith.extui %21 : i1 to i32
    %c0_i32_15 = arith.constant 0 : i32
    %23 = arith.cmpi ne, %22, %c0_i32_15 : i32
    scf.if %23 {
      %c0_16 = arith.constant 0 : index
      %c0_17 = arith.constant 0 : index
      %24 = vector.load %arg8[%c0_16, %c0_17] : memref<16x1xf32, #tpu.memory_space<vmem>>, vector<16x1xf32>
      %c0_18 = arith.constant 0 : index
      %25 = memref.load %arg6[%c0_18] : memref<1xf32, #tpu.memory_space<smem>>
      %26 = vector.broadcast %25 : f32 to vector<16x1xf32>
      %27 = arith.addf %24, %26 : vector<16x1xf32>
      %c0_19 = arith.constant 0 : index
      %c0_20 = arith.constant 0 : index
      %28 = vector.load %arg7[%c0_19, %c0_20] : memref<16x1xf32, #tpu.memory_space<vmem>>, vector<16x1xf32>
      tpu.vector_store %arg7[%c0_19, %c0_20], %27 {strides = array<i32>} : memref<16x1xf32, #tpu.memory_space<vmem>>, vector<16x1xf32>,
    } else {
    }
    return
  }
  func.func @transform_0(%arg0: i32, %arg1: i32) -> (i32, i32) {
    %c0_i32 = arith.constant 0 : i32
    %c0_i32_0 = arith.constant 0 : i32
    return %arg0, %c0_i32 : i32, i32
  }
  func.func @transform_1(%arg0: i32, %arg1: i32) -> (i32, i32) {
    %c0_i32 = arith.constant 0 : i32
    %c0_i32_0 = arith.constant 0 : i32
    return %c0_i32, %arg1 : i32, i32
  }
  func.func @transform_2(%arg0: i32, %arg1: i32) -> (i32, i32) {
    %c0_i32 = arith.constant 0 : i32
    %c0_i32_0 = arith.constant 0 : i32
    return %c0_i32, %arg1 : i32, i32
  }
  func.func @transform_3(%arg0: i32, %arg1: i32) -> (i32, i32) {
    %c0_i32 = arith.constant 0 : i32
    %c0_i32_0 = arith.constant 0 : i32
    return %c0_i32, %arg1 : i32, i32
  }
  func.func @transform_4(%arg0: i32, %arg1: i32) -> i32 {
    %c0_i32 = arith.constant 0 : i32
    %c0_i32_0 = arith.constant 0 : i32
    return %c0_i32 : i32
  }
  func.func @transform_5(%arg0: i32, %arg1: i32) -> (i32, i32) {
    %c0_i32 = arith.constant 0 : i32
    %c0_i32_0 = arith.constant 0 : i32
    return %arg0, %c0_i32 : i32, i32
  }
}

</mosaic_0001>

<llo_original>
// kernel: value_head_forward.1
$region0: #{value_head_forward.1}
  #allocation0 [shape = 'u32[]', space=smem, size = 0x4, offset = 0x4, fixed_abs, tag = 'smem constant byte address 0x4 - core index']
  #allocation1 [shape = 'u32[144,128]{1,0:T(1,128)}', space=vmem, size = 0x12000, scoped, tag = 'internal scratch']
  #allocation2 [shape = 'f32[16,1]{1,0:T(8,128)}', space=vmem, size = 0x2000, scoped, tag = 'scratch operand']
  #allocation3 [shape = 'f32[1]{0:T(128)S(6)}', space=smem, size = 0x200, scoped, tag = 'scoped memory for value_head_forward.1']
  %s0 = inlined_call_operand.hbm [shape: f32[16,32], index: 0, kind: input, shape index: {}]
  %s1 = inlined_call_operand.hbm [shape: f32[32,128], index: 1, kind: input, shape index: {}]
  %s2 = inlined_call_operand.vmem [shape: f32[1,128], index: 2, kind: input, shape index: {}]
  %s3 = inlined_call_operand.vmem [shape: f32[1,128], index: 3, kind: input, shape index: {}]
  %s4 = inlined_call_operand.<no memory space> [shape: f32[1], index: 4, kind: input, shape index: {}]
  %s5 = inlined_call_operand.vmem [shape: f32[16,1], index: 5, kind: output, shape index: {}]
  %s6 = sld [smem:[#allocation0]]
  $region46: #{value_head_forward.1} parent=0
    _
  %s8 = ssub.s32 1, %s6
  %s9 = scalar_select 0, %s8, %s6
  %10 = sst [smem:[#allocation3]] %s4
  $region1: #{value_head_forward.1} parent=0
    #allocation4 [shape = 'u8[8192]{0}', space=vmem, size = 0x2000, scoped, tag = 'input window, operand 0, single buffered']
    #allocation5 [shape = 's32[1]{0}', space=sflag, size = 0x4, scoped, tag = 'scoped memory for value_head_forward.1']
    #allocation6 [shape = 'u8[16384]{0}', space=vmem, size = 0x4000, scoped, tag = 'input window, operand 1, single buffered']
    #allocation7 [shape = 's32[1]{0}', space=sflag, size = 0x4, scoped, tag = 'scoped memory for value_head_forward.1']
    %11 = vsyncpa [#allocation5], 0
    %12 = vsyncpa [#allocation7], 0
    // Predicated region
    $region2: #{value_head_forward.1} parent=1 // pred_check
      _
    $region3: #{value_head_forward.1} parent=1 // pred_check_branch
      %14 = sbr.rel (0) target = $region5
    $region4: #{value_head_forward.1} parent=1 // pred_region
      %s16 = ssub.s32 256, 256
      %17 = vsyncadd [#allocation5], %s16
      %s18 = sshll.u32 [#allocation4], 4
      %s19 = int_to_ptr.vmem [resolvable:$true] %s18
      %24 = dma.hbm_to_vmem [thread:$0]  %s0, 256, %s19, [#allocation5], 128, 128, 8
    $region5: #{value_head_forward.1} parent=1 // pred_fallthru
      _
    // Predicated region
    $region6: #{value_head_forward.1} parent=1 // pred_check
      _
    $region7: #{value_head_forward.1} parent=1 // pred_check_branch
      %26 = sbr.rel (0) target = $region9
    $region8: #{value_head_forward.1} parent=1 // pred_region
      %s28 = ssub.s32 512, 512
      %29 = vsyncadd [#allocation7], %s28
      %s30 = sshll.u32 [#allocation6], 4
      %s31 = int_to_ptr.vmem [resolvable:$true] %s30
      %36 = dma.hbm_to_vmem [thread:$0]  %s1, 512, %s31, [#allocation7], 128, 128, 8
    $region9: #{value_head_forward.1} parent=1 // pred_fallthru
      _
    // Predicated region
    $region10: #{value_head_forward.1} parent=1 // pred_check
      _
    $region11: #{value_head_forward.1} parent=1 // pred_check_branch
      %38 = sbr.rel (0) target = $region13
    $region12: #{value_head_forward.1} parent=1 // pred_region
      _
    $region13: #{value_head_forward.1} parent=1 // pred_fallthru
      _
    // Predicated region
    $region14: #{value_head_forward.1} parent=1 // pred_check
      _
    $region15: #{value_head_forward.1} parent=1 // pred_check_branch
      %40 = sbr.rel (0) target = $region17
    $region16: #{value_head_forward.1} parent=1 // pred_region
      _
    $region17: #{value_head_forward.1} parent=1 // pred_fallthru
      _
    // Predicated region
    $region18: #{value_head_forward.1} parent=1 // pred_check
      _
    $region19: #{value_head_forward.1} parent=1 // pred_check_branch
      %42 = sbr.rel (0) target = $region21
    $region20: #{value_head_forward.1} parent=1 // pred_region
      _
    $region21: #{value_head_forward.1} parent=1 // pred_fallthru
      _
    // Predicated region
    $region22: #{value_head_forward.1} parent=1 // pred_check
      _
    $region23: #{value_head_forward.1} parent=1 // pred_check_branch
      %44 = sbr.rel (0) target = $region25
    $region24: #{value_head_forward.1} parent=1 // pred_region
      %45 = dma.done [#allocation5], 256
    $region25: #{value_head_forward.1} parent=1 // pred_fallthru
      _
    // Predicated region
    $region26: #{value_head_forward.1} parent=1 // pred_check
      _
    $region27: #{value_head_forward.1} parent=1 // pred_check_branch
      %47 = sbr.rel (0) target = $region29
    $region28: #{value_head_forward.1} parent=1 // pred_region
      %48 = dma.done [#allocation7], 512
    $region29: #{value_head_forward.1} parent=1 // pred_fallthru
      _
    %p50 = scmp.eq.s32.totalorder 0, 0
    // Predicated region
    $region30: #{value_head_forward.1} parent=1 // pred_check
      %p51 = pneg %p50
    $region31: #{value_head_forward.1} parent=1 // pred_check_branch
      %53 = sbr.rel (%p51) target = $region33
    $region32: #{value_head_forward.1} parent=1 // pred_region
      %vm54 = vcmask 7168
      %55 = vst.msk [vmem:[#allocation2] sm:$0xff] %vm54, 0.0
      %56 = vst.msk [vmem:[#allocation2 + $0x8] sm:$0xff] %vm54, 0.0
    $region33: #{value_head_forward.1} parent=1 // pred_fallthru
      _
    %v57 = vld [vmem:[#allocation4] sm:$0xff]
    %v58 = vld [vmem:[#allocation4 + $0x8] sm:$0xff]
    %v59 = vpack.c.bf16 %v58, %v57
    %v60 = vld [vmem:[#allocation2] sm:$0xff]
    %v61 = vld [vmem:[#allocation2 + $0x8] sm:$0xff]
    %v62 = vld [vmem:[#allocation6] sm:$0xff]
    %v63 = vld [vmem:[#allocation6 + $0x8] sm:$0xff]
    %v64 = vld [vmem:[#allocation6 + $0x10] sm:$0xff]
    %v65 = vld [vmem:[#allocation6 + $0x18] sm:$0xff]
    %v66 = vld [vmem:[%s2] sm:$0x1]
    %v67 = vld [vmem:[%s3] sm:$0x1]
    %v68 = vpack.c.bf16 %v63, %v62
    %v69 = vpack.c.bf16 %v65, %v64
    %v71 = vlaneseq
    %v72 = vshrl.u32 %v71, 7
    %v73 = vsub.s32 0, %v72
    %v74 = vrot.slane %v66, %v73
    %vm76 = vcmask 261120
    %v78 = vsel %vm76, %v59, 0
    %80 = vmatprep.subr.bf16.mxu0 0
    %81 = vmatpush1.bf16.msra.mxu0 %v68
    %82 = vmatprep.subr.bf16.mxu0 0
    %83 = vmatpush1.bf16.msra.mxu0 %v69
    %84 = vmatprep.subr.bf16.mxu0 0
    %85 = vmatpush1.bf16.msra.mxu0 0
    %86 = vmatprep.subr.bf16.mxu0 0
    %87 = vmatpush1.bf16.msra.mxu0 0
    %88 = vmatprep.subr.bf16.mxu0 0
    %89 = vmatpush1.bf16.msra.mxu0 0
    %90 = vmatprep.subr.bf16.mxu0 0
    %91 = vmatpush1.bf16.msra.mxu0 0
    %92 = vmatprep.subr.bf16.mxu0 0
    %93 = vmatpush1.bf16.msra.mxu0 0
    %94 = vmatprep.subr.bf16.mxu0 0
    %95 = vmatpush1.bf16.msra.mxu0 0
    %96 = vmatprep.subr.bf16.mxu0 0
    %97 = vmatpush1.bf16.msra.mxu0 0
    %98 = vmatprep.subr.bf16.mxu0 0
    %99 = vmatpush1.bf16.msra.mxu0 0
    %100 = vmatprep.subr.bf16.mxu0 0
    %101 = vmatpush1.bf16.msra.mxu0 0
    %102 = vmatprep.subr.bf16.mxu0 0
    %103 = vmatpush1.bf16.msra.mxu0 0
    %104 = vmatprep.subr.bf16.mxu0 0
    %105 = vmatpush1.bf16.msra.mxu0 0
    %106 = vmatprep.subr.bf16.mxu0 0
    %107 = vmatpush1.bf16.msra.mxu0 0
    %108 = vmatprep.subr.bf16.mxu0 0
    %109 = vmatpush1.bf16.msra.mxu0 0
    %110 = vmatprep.subr.bf16.mxu0 0
    %111 = vmatpush1.bf16.msra.mxu0 0
    %112 = vmatprep.mubr.bf16.mxu0 0
    %113 = vmatmul.mubr.bf16.gmra.mrb[0].mxu0 %v78
    %v114 = vpop.f32.mrb[0].mxu0
    %v115 = vadd.f32 %v74, %v114
    %v116 = vpop.f32.mrb[0].mxu0
    %v117 = vpop.f32.mrb[0].mxu0
    %v118 = vadd.f32 %v74, %v117
    %v119 = vpop.f32.mrb[0].mxu0
    %120 = vdwg.mxu0
    %v121 = vmax.f32 %v115, 0.0
    %v122 = vmax.f32 %v118, 0.0
    %v124 = vlaneseq
    %v125 = vshrl.u32 %v124, 7
    %v126 = vsub.s32 0, %v125
    %v127 = vrot.slane %v67, %v126
    %v129 = vmul.f32 %v121, %v127
    %v130 = vmul.f32 %v122, %v127
    %131 = vadd.xlane.f32.xlu0 %v129
    %v132 = vpop.xlane.xlu0 %131
    %133 = vadd.xlane.f32.xlu0 %v130
    %v134 = vpop.xlane.xlu0 %133
    %v135 = vadd.f32 %v60, %v132
    %v136 = vadd.f32 %v61, %v134
    %vm137 = vcmask 7168
    %138 = vst.msk [vmem:[#allocation2] sm:$0xff] %vm137, %v135
    %139 = vst.msk [vmem:[#allocation2 + $0x8] sm:$0xff] %vm137, %v136
    // Predicated region
    $region34: #{value_head_forward.1} parent=1 // pred_check
      %p140 = pneg %p50
    $region35: #{value_head_forward.1} parent=1 // pred_check_branch
      %142 = sbr.rel (%p140) target = $region37
    $region36: #{value_head_forward.1} parent=1 // pred_region
      %v143 = vld [vmem:[#allocation2] sm:$0xff]
      %v144 = vld [vmem:[#allocation2 + $0x8] sm:$0xff]
      %s145 = sld [smem:[#allocation3]]
      %v146 = vstv %s145
      %v147 = vadd.f32 %v143, %v146
      %v148 = vadd.f32 %v144, %v146
      %149 = vst.msk [vmem:[%s5] sm:$0xff] %vm137, %v147
      %150 = vst.msk [vmem:[%s5 + $0x8] sm:$0xff] %vm137, %v148
    $region37: #{value_head_forward.1} parent=1 // pred_fallthru
      _
    // Predicated region
    $region38: #{value_head_forward.1} parent=1 // pred_check
      _
    $region39: #{value_head_forward.1} parent=1 // pred_check_branch
      %152 = sbr.rel (0) target = $region41
    $region40: #{value_head_forward.1} parent=1 // pred_region
      _
    $region41: #{value_head_forward.1} parent=1 // pred_fallthru
      _
    // Predicated region
    $region42: #{value_head_forward.1} parent=1 // pred_check
      _
    $region43: #{value_head_forward.1} parent=1 // pred_check_branch
      %154 = sbr.rel (0) target = $region45
    $region44: #{value_head_forward.1} parent=1 // pred_region
      _
    $region45: #{value_head_forward.1} parent=1 // pred_fallthru
      _
    %155 = vsyncpa [#allocation5], 1
    %156 = vsyncpa [#allocation7], 1

</llo_original>
